<compile_context>
chip_gen: v7x
topology: tpu7x:2x2x1
jax: 0.10.0
libtpu: 0.0.40
codegen_flags: <defaults>
</compile_context>

<pallas_src>
import functools

import jax
import jax.numpy as jnp
from jax import lax
from jax.experimental import pallas as pl
from jax.experimental.pallas import tpu as pltpu


def _rmsnorm_kernel(x_ref, w_ref, o_ref, *, eps, inv_d):
    # x_ref: [tm, D], w_ref: [1, D], o_ref: [tm, D]
    x = x_ref[...].astype(jnp.float32)
    # Row-wise mean of squares: XLU reduce + cheap scalar-constant scale.
    ms = jnp.sum(x * x, axis=-1, keepdims=True) * inv_d       # [tm, 1]
    inv = lax.rsqrt(ms + eps)                                  # EUP slot (free)
    w = w_ref[...].astype(jnp.float32)                         # [1, D] bcast over rows
    o_ref[...] = (x * inv * w).astype(o_ref.dtype)


def rms_norm(x, weight, eps: float = 1e-5, block_rows: int = 1024):
    """x: [..., d_model]; weight: [d_model]. Returns same shape/dtype as x."""
    orig_shape = x.shape
    D = orig_shape[-1]
    assert weight.shape == (D,), f"weight shape {weight.shape} != ({D},)"

    M = 1
    for s in orig_shape[:-1]:
        M *= s

    x2 = x.reshape(M, D)          # [M, D] row-major slab
    w2 = weight.reshape(1, D)     # [1, D]: 2-D, lane-dense, resident block

    # --- pick the row tile -------------------------------------------------
    # VMEM for pipelined blocks ~= 2 (double-buffer) * (in + out) * tm*D*itemsize.
    # Keep it under ~16 MiB so we comfortably fit every generation's scoped
    # limit (v5e 16 MiB default is raised below), leaving room for temporaries.
    itemsize = jnp.dtype(x.dtype).itemsize
    vmem_budget = 16 * 1024 * 1024
    rows_by_vmem = max(8, vmem_budget // (4 * D * itemsize))

    tm = min(block_rows, M, rows_by_vmem)
    if M >= 8:
        tm = max(8, (tm // 8) * 8)   # sublane-aligned row tile
    else:
        tm = M                       # tiny input: single full block

    grid = (pl.cdiv(M, tm),)

    out = pl.pallas_call(
        functools.partial(_rmsnorm_kernel, eps=eps, inv_d=1.0 / D),
        out_shape=jax.ShapeDtypeStruct((M, D), x.dtype),
        grid=grid,
        in_specs=[
            pl.BlockSpec((tm, D), lambda i: (i, 0)),   # activation tile
            pl.BlockSpec((1, D), lambda i: (0, 0)),    # weight: constant block index
        ],
        out_specs=pl.BlockSpec((tm, D), lambda i: (i, 0)),
        compiler_params=pltpu.CompilerParams(
            dimension_semantics=("parallel",),          # rows independent
            vmem_limit_bytes=48 * 1024 * 1024,          # headroom for big tiles
        ),
    )(x2, w2)

    return out.reshape(orig_shape)


def _reference(x, weight, eps: float = 1e-5):
    xf = x.astype(jnp.float32)
    ms = jnp.mean(jnp.square(xf), axis=-1, keepdims=True)
    return (xf * lax.rsqrt(ms + eps) * weight.astype(jnp.float32)).astype(x.dtype)


if __name__ == "__main__":
    key = jax.random.PRNGKey(0)
    k1, k2 = jax.random.split(key, 2)

    # Small shapes consistent with the SSSM module: x = [batch, channels, seq, d_model]
    B, C, S, d_model = 2, 4, 16, 128
    eps = 1e-5

    x = jax.random.normal(k1, (B, C, S, d_model), dtype=jnp.float32)
    # nn.Parameter init is ones; use a non-trivial deterministic weight so the
    # scale path is actually exercised.
    weight = 1.0 + 0.1 * jax.random.normal(k2, (d_model,), dtype=jnp.float32)

    # block_rows=32 -> grid=(4,): exercises tiling, pipelining, parallel semantics.
    out = rms_norm(x, weight, eps=eps, block_rows=32)
    out = jax.block_until_ready(out)

    ref = _reference(x, weight, eps=eps)
    assert out.shape == x.shape
    assert jnp.allclose(out, ref, atol=1e-5, rtol=1e-5), "mismatch vs reference"

    print("KERNEL_OK")
</pallas_src>

<mosaic_0001>
module attributes {stable_mosaic.version = 11 : i64} {
  func.func @_rmsnorm_kernel(%arg0: i32, %arg1: memref<32x128xf32, #tpu.memory_space<vmem>>, %arg2: memref<1x128xf32, #tpu.memory_space<vmem>>, %arg3: memref<32x128xf32, #tpu.memory_space<vmem>>) attributes {dimension_semantics = [#tpu.dimension_semantics<parallel>], iteration_bounds = array<i64: 4>, scalar_prefetch = 0 : i64, scratch_operands = 0 : i64, tpu.core_type = #tpu.core_type<tc>, window_params = [{transform_indices = @transform_0, window_bounds = array<i64: 32, 128>}, {pipeline_mode = #tpu.pipeline_mode<synchronous>, transform_indices = @transform_1, window_bounds = array<i64: 1, 128>}, {transform_indices = @transform_2, window_bounds = array<i64: 32, 128>}]} {
    %c0 = arith.constant 0 : index
    %c0_0 = arith.constant 0 : index
    %0 = vector.load %arg1[%c0, %c0_0] : memref<32x128xf32, #tpu.memory_space<vmem>>, vector<32x128xf32>
    %1 = arith.mulf %0, %0 : vector<32x128xf32>
    %cst = arith.constant dense<0.000000e+00> : vector<32xf32>
    %2 = vector.multi_reduction <add>, %1, %cst [1] : vector<32x128xf32> to vector<32xf32>
    %3 = vector.shape_cast %2 : vector<32xf32> to vector<32x1xf32>
    %cst_1 = arith.constant 7.812500e-03 : f32
    %4 = vector.broadcast %cst_1 : f32 to vector<32x1xf32>
    %5 = arith.mulf %3, %4 : vector<32x1xf32>
    %cst_2 = arith.constant 9.99999974E-6 : f32
    %6 = vector.broadcast %cst_2 : f32 to vector<32x1xf32>
    %7 = arith.addf %5, %6 : vector<32x1xf32>
    %8 = math.rsqrt %7 : vector<32x1xf32>
    %c0_3 = arith.constant 0 : index
    %c0_4 = arith.constant 0 : index
    %9 = vector.load %arg2[%c0_3, %c0_4] : memref<1x128xf32, #tpu.memory_space<vmem>>, vector<1x128xf32>
    %10 = vector.broadcast %8 : vector<32x1xf32> to vector<32x128xf32>
    %11 = arith.mulf %0, %10 : vector<32x128xf32>
    %12 = vector.broadcast %9 : vector<1x128xf32> to vector<32x128xf32>
    %13 = arith.mulf %11, %12 : vector<32x128xf32>
    %c0_5 = arith.constant 0 : index
    %c0_6 = arith.constant 0 : index
    %14 = vector.load %arg3[%c0_5, %c0_6] : memref<32x128xf32, #tpu.memory_space<vmem>>, vector<32x128xf32>
    tpu.vector_store %arg3[%c0_5, %c0_6], %13 {strides = array<i32>} : memref<32x128xf32, #tpu.memory_space<vmem>>, vector<32x128xf32>,
    return
  }
  func.func @transform_0(%arg0: i32) -> (i32, i32) {
    %c0_i32 = arith.constant 0 : i32
    %c0_i32_0 = arith.constant 0 : i32
    return %arg0, %c0_i32 : i32, i32
  }
  func.func @transform_1(%arg0: i32) -> (i32, i32) {
    %c0_i32 = arith.constant 0 : i32
    %c0_i32_0 = arith.constant 0 : i32
    %c0_i32_1 = arith.constant 0 : i32
    return %c0_i32, %c0_i32_0 : i32, i32
  }
  func.func @transform_2(%arg0: i32) -> (i32, i32) {
    %c0_i32 = arith.constant 0 : i32
    %c0_i32_0 = arith.constant 0 : i32
    return %arg0, %c0_i32 : i32, i32
  }
}

</mosaic_0001>

<llo_original>
// kernel: tpu_custom_call.1
$region0: #{tpu_custom_call.1}
  #allocation0 [shape = 'u32[]', space=smem, size = 0x4, offset = 0x4, fixed_abs, tag = 'smem constant byte address 0x4 - core index']
  #allocation1 [shape = 'u32[144,128]{1,0:T(1,128)}', space=vmem, size = 0x12000, scoped, tag = 'internal scratch']
  %s0 = inlined_call_operand.hbm [shape: f32[128,128], index: 0, kind: input, shape index: {}]
  %s1 = inlined_call_operand.vmem [shape: f32[1,128], index: 1, kind: input, shape index: {}]
  %s2 = inlined_call_operand.hbm [shape: f32[128,128], index: 2, kind: output, shape index: {}]
  %s3 = sld [smem:[#allocation0]]
  $region45: #{tpu_custom_call.1} parent=0
    _
  %s5 = ssub.s32 1, %s3
  %s6 = scalar_select 0, %s5, %s3
  $region1: #{tpu_custom_call.1} parent=0
    #allocation2 [shape = 'u8[32768]{0}', space=vmem, size = 0x8000, scoped, tag = 'input window, operand 0']
    #allocation3 [shape = 's32[2]{0}', space=sflag, size = 0x8, scoped, tag = 'scoped memory for tpu_custom_call.1']
    #allocation4 [shape = 's32[2]{0}', space=sflag, size = 0x8, scoped, tag = 'scoped memory for tpu_custom_call.1']
    #allocation5 [shape = 'u8[32768]{0}', space=vmem, size = 0x8000, scoped, tag = 'output window, operand 0']
    %7 = vsyncpa [#allocation3], 0
    %s8 = scalar_lea.sflag [#allocation3], 1
    %9 = vsyncpa %s8, 0
    %10 = vsyncpa [#allocation4], 0
    %s11 = scalar_lea.sflag [#allocation4], 1
    %12 = vsyncpa %s11, 0
    loop: start=0, step=1, limit=6
    $region2: #{tpu_custom_call.1} parent=1 // loop_pre_header
      _
    $region3: #{tpu_custom_call.1} parent=1 // loop_header
      %s14 = sphi 0, %s18
      %p15 = scmp.ge.s32.totalorder %s14, 6
      %s24 = sphi 0, %s26
      %s27 = sphi 0, %s24
      %s28 = sphi 0, %s27
      %s44 = sphi 0, %s28
      %s48 = sphi 0, %s48
      %s50 = sphi 0, %s48
      %s51 = sphi 0, %s50
      %s65 = sphi 0, %s51
      %s71 = sphi 0, %s73
      %s74 = sphi 0, %s71
      %s75 = sphi 0, %s74
      %s91 = sphi 0, %s75
    $region4: #{tpu_custom_call.1} parent=1 // loop_header_branch
      %17 = sbr.rel (%p15) target = $region8
    $region5: #{tpu_custom_call.1} parent=1 // loop_body
      %s19 = ssub.s32 %s14, 1
      %s20 = ssub.s32 %s14, 2
      %s21 = sadd.s32 %s14, 1
      %s22 = ssub.s32 %s14, %s21
      %p23 = scmp.eq.s32.totalorder %s22, 0
      %s25 = sadd.s32 %s24, 1
      %s26 = scalar_select %p23, %s24, %s25
      %p29 = pneg %p23
      %p30 = scmp.eq.s32.totalorder %s14, 3
      %p31 = por %p29, %p30
      %p32 = scmp.ne.s32.totalorder %s24, %s27
      %p33 = scmp.eq.s32.totalorder %s14, 0
      %p34 = por %p32, %p33
      %p35 = scmp.ne.s32.totalorder %s24, %s27
      %p36 = scmp.eq.s32.totalorder %s19, 3
      %p37 = por %p35, %p36
      %p38 = scmp.ne.s32.totalorder %s27, %s28
      %p39 = scmp.eq.s32.totalorder %s19, 0
      %p40 = por %p38, %p39
      %p41 = scmp.ne.s32.totalorder %s27, %s28
      %p42 = scmp.eq.s32.totalorder %s20, 3
      %p43 = por %p41, %p42
      %p45 = scmp.ne.s32.totalorder %s28, %s44
      %p46 = scmp.eq.s32.totalorder %s20, 0
      %p47 = por %p45, %p46
      %s49 = sadd.s32 %s48, 1
      %p52 = scmp.eq.s32.totalorder %s14, 3
      %p53 = scmp.ne.s32.totalorder %s48, %s50
      %p54 = scmp.eq.s32.totalorder %s14, 0
      %p55 = por %p53, %p54
      %p56 = scmp.ne.s32.totalorder %s48, %s50
      %p57 = scmp.eq.s32.totalorder %s19, 3
      %p58 = por %p56, %p57
      %p59 = scmp.ne.s32.totalorder %s50, %s51
      %p60 = scmp.eq.s32.totalorder %s19, 0
      %p61 = por %p59, %p60
      %p62 = scmp.ne.s32.totalorder %s50, %s51
      %p63 = scmp.eq.s32.totalorder %s20, 3
      %p64 = por %p62, %p63
      %p66 = scmp.ne.s32.totalorder %s51, %s65
      %p67 = scmp.eq.s32.totalorder %s20, 0
      %p68 = por %p66, %p67
      %s69 = ssub.s32 %s14, %s21
      %p70 = scmp.eq.s32.totalorder %s69, 0
      %s72 = sadd.s32 %s71, 1
      %s73 = scalar_select %p70, %s71, %s72
      %p76 = pneg %p70
      %p77 = scmp.eq.s32.totalorder %s14, 3
      %p78 = por %p76, %p77
      %p79 = scmp.ne.s32.totalorder %s71, %s74
      %p80 = scmp.eq.s32.totalorder %s14, 0
      %p81 = por %p79, %p80
      %p82 = scmp.ne.s32.totalorder %s71, %s74
      %p83 = scmp.eq.s32.totalorder %s19, 3
      %p84 = por %p82, %p83
      %p85 = scmp.ne.s32.totalorder %s74, %s75
      %p86 = scmp.eq.s32.totalorder %s19, 0
      %p87 = por %p85, %p86
      %p88 = scmp.ne.s32.totalorder %s74, %s75
      %p89 = scmp.eq.s32.totalorder %s20, 3
      %p90 = por %p88, %p89
      %p92 = scmp.ne.s32.totalorder %s75, %s91
      %p93 = scmp.eq.s32.totalorder %s20, 0
      %p94 = por %p92, %p93
      %p95 = scmp.le.s32.totalorder 1, %s14
      %p96 = scmp.lt.s32.totalorder %s14, 5
      %p97 = pnand %p95, %p96
      %p98 = pneg %p97
      // Predicated region
      $region9: #{tpu_custom_call.1} parent=5 // pred_check
        _
      $region10: #{tpu_custom_call.1} parent=5 // pred_check_branch
        %100 = sbr.rel (%p97) target = $region12
      $region11: #{tpu_custom_call.1} parent=5 // pred_region
        %s101 = ssub.s32 %s14, 1
        // Predicated region
        $region13: #{tpu_custom_call.1} parent=11 // pred_check
          %p102 = pneg %p61
        $region14: #{tpu_custom_call.1} parent=11 // pred_check_branch
          %104 = sbr.rel (%p102) target = $region16
        $region15: #{tpu_custom_call.1} parent=11 // pred_region
          _
        $region16: #{tpu_custom_call.1} parent=11 // pred_fallthru
          _
      $region12: #{tpu_custom_call.1} parent=5 // pred_fallthru
        _
      %p105 = scmp.lt.s32.totalorder %s14, 4
      // Predicated region
      $region17: #{tpu_custom_call.1} parent=5 // pred_check
        %p106 = pneg %p105
      $region18: #{tpu_custom_call.1} parent=5 // pred_check_branch
        %108 = sbr.rel (%p106) target = $region20
      $region19: #{tpu_custom_call.1} parent=5 // pred_region
        // Predicated region
        $region21: #{tpu_custom_call.1} parent=19 // pred_check
          %p109 = pneg %p34
        $region22: #{tpu_custom_call.1} parent=19 // pred_check_branch
          %111 = sbr.rel (%p109) target = $region24
        $region23: #{tpu_custom_call.1} parent=19 // pred_region
          %s112 = sand.u32 %s24, 1
          %s113 = scalar_lea.sflag [#allocation3], %s112
          %s114 = sand.u32 %s24, 1
          %s115 = smul.addr %s114, 32
          %s116 = scalar_lea.vmem [#allocation2], %s115
          %s117 = smul.u32 4, %s14
          %s119 = ssub.s32 512, 512
          %120 = vsyncadd %s113, %s119
          %s121 = smul.addr %s117, 128
          %s122 = scalar_lea.hbm %s0, %s121
          %s123 = sshll.u32 %s116, 4
          %s124 = int_to_ptr.vmem [resolvable:$true] %s123
          %129 = dma.hbm_to_vmem [thread:$0]  %s122, 512, %s124, %s113, 128, 128, 8
        $region24: #{tpu_custom_call.1} parent=19 // pred_fallthru
          _
      $region20: #{tpu_custom_call.1} parent=5 // pred_fallthru
        _
      %p130 = scmp.le.s32.totalorder 1, %s14
      %p131 = scmp.lt.s32.totalorder %s14, 5
      %p132 = pnand %p130, %p131
      %p133 = pneg %p132
      // Predicated region
      $region25: #{tpu_custom_call.1} parent=5 // pred_check
        _
      $region26: #{tpu_custom_call.1} parent=5 // pred_check_branch
        %135 = sbr.rel (%p132) target = $region28
      $region27: #{tpu_custom_call.1} parent=5 // pred_region
        %s136 = ssub.s32 %s14, 1
        %s137 = sand.u32 %s27, 1
        %s138 = scalar_lea.sflag [#allocation3], %s137
        %s139 = sand.u32 %s27, 1
        %s140 = smul.addr %s139, 32
        %s141 = scalar_lea.vmem [#allocation2], %s140
        // Predicated region
        $region29: #{tpu_custom_call.1} parent=27 // pred_check
          %p142 = pneg %p40
        $region30: #{tpu_custom_call.1} parent=27 // pred_check_branch
          %144 = sbr.rel (%p142) target = $region32
        $region31: #{tpu_custom_call.1} parent=27 // pred_region
          %145 = dma.done %s138, 512
        $region32: #{tpu_custom_call.1} parent=27 // pred_fallthru
          _
        %s146 = sand.u32 %s27, 1
        %s147 = scalar_lea.sflag [#allocation3], %s146
        %s148 = sand.u32 %s27, 1
        %s149 = smul.addr %s148, 32
        %s150 = scalar_lea.vmem [#allocation2], %s149
        %p151 = pneg %p40
        %p152 = pneg %p37
        %p153 = pneg %p61
        %p154 = pneg %p58
        %p155 = pneg %p87
        %p156 = pneg %p84
        %s157 = sand.u32 %s74, 1
        %s158 = scalar_lea.sflag [#allocation4], %s157
        %s159 = sand.u32 %s74, 1
        %s160 = smul.addr %s159, 32
        %s161 = scalar_lea.vmem [#allocation5], %s160
        %s162 = smul.u32 4, %s19
        %s163 = smul.u32 4, %s19
        %v164 = vld [vmem:[%s141] sm:$0xff]
        %v165 = vld [vmem:[%s141 + $0x8] sm:$0xff]
        %v166 = vld [vmem:[%s141 + $0x10] sm:$0xff]
        %v167 = vld [vmem:[%s141 + $0x18] sm:$0xff]
        %v168 = vmul.f32 %v164, %v164
        %v169 = vmul.f32 %v165, %v165
        %v170 = vmul.f32 %v166, %v166
        %v171 = vmul.f32 %v167, %v167
        %172 = vadd.xlane.f32.xlu0 %v168
        %v173 = vpop.xlane.xlu0 %172
        %174 = vadd.xlane.f32.xlu0 %v169
        %v175 = vpop.xlane.xlu0 %174
        %176 = vadd.xlane.f32.xlu0 %v170
        %v177 = vpop.xlane.xlu0 %176
        %178 = vadd.xlane.f32.xlu0 %v171
        %v179 = vpop.xlane.xlu0 %178
        %v180 = vmul.f32 %v173, 0.0078125
        %v181 = vmul.f32 %v175, 0.0078125
        %v182 = vmul.f32 %v177, 0.0078125
        %v183 = vmul.f32 %v179, 0.0078125
        %v184 = vadd.f32 %v180, 1e-05
        %v185 = vadd.f32 %v181, 1e-05
        %v186 = vadd.f32 %v182, 1e-05
        %v187 = vadd.f32 %v183, 1e-05
        %v188 = vrsqrt.pop %v184
        %v189 = vrsqrt.pop %v185
        %v190 = vrsqrt.pop %v186
        %v191 = vrsqrt.pop %v187
        %v192 = vld [vmem:[%s1] sm:$0x1]
        %v193 = vmul.f32 %v164, %v188
        %v194 = vmul.f32 %v165, %v189
        %v195 = vmul.f32 %v166, %v190
        %v196 = vmul.f32 %v167, %v191
        %v198 = vlaneseq
        %v199 = vshrl.u32 %v198, 7
        %v200 = vsub.s32 0, %v199
        %v201 = vrot.slane %v192, %v200
        %v203 = vmul.f32 %v193, %v201
        %v204 = vmul.f32 %v194, %v201
        %v205 = vmul.f32 %v195, %v201
        %v206 = vmul.f32 %v196, %v201
        %207 = vst [vmem:[%s161] sm:$0xff] %v203
        %208 = vst [vmem:[%s161 + $0x8] sm:$0xff] %v204
        %209 = vst [vmem:[%s161 + $0x10] sm:$0xff] %v205
        %210 = vst [vmem:[%s161 + $0x18] sm:$0xff] %v206
        %s211 = sand.u32 %s74, 1
        %s212 = scalar_lea.sflag [#allocation4], %s211
        %s213 = sand.u32 %s74, 1
        %s214 = smul.addr %s213, 32
        %s215 = scalar_lea.vmem [#allocation5], %s214
        // Predicated region
        $region33: #{tpu_custom_call.1} parent=27 // pred_check
          %p216 = pneg %p84
        $region34: #{tpu_custom_call.1} parent=27 // pred_check_branch
          %218 = sbr.rel (%p216) target = $region36
        $region35: #{tpu_custom_call.1} parent=27 // pred_region
          %s219 = smul.u32 4, %s19
          %s221 = ssub.s32 512, 512
          %222 = vsyncadd %s212, %s221
          %s223 = smul.addr %s219, 128
          %s224 = scalar_lea.hbm %s2, %s223
          %s225 = sshll.u32 %s215, 4
          %s226 = int_to_ptr.vmem [resolvable:$true] %s225
          %231 = dma.vmem_to_hbm [thread:$0]  %s226, 512, %s224, %s212, 128, 128, 8
        $region36: #{tpu_custom_call.1} parent=27 // pred_fallthru
          _
      $region28: #{tpu_custom_call.1} parent=5 // pred_fallthru
        _
      %p232 = scmp.le.s32.totalorder 2, %s14
      // Predicated region
      $region37: #{tpu_custom_call.1} parent=5 // pred_check
        %p233 = pneg %p232
      $region38: #{tpu_custom_call.1} parent=5 // pred_check_branch
        %235 = sbr.rel (%p233) target = $region40
      $region39: #{tpu_custom_call.1} parent=5 // pred_region
        %s236 = ssub.s32 %s14, 2
        // Predicated region
        $region41: #{tpu_custom_call.1} parent=39 // pred_check
          %p237 = pneg %p90
        $region42: #{tpu_custom_call.1} parent=39 // pred_check_branch
          %239 = sbr.rel (%p237) target = $region44
        $region43: #{tpu_custom_call.1} parent=39 // pred_region
          %s240 = sand.u32 %s75, 1
          %s241 = scalar_lea.sflag [#allocation4], %s240
          %s242 = sand.u32 %s75, 1
          %s243 = smul.addr %s242, 32
          %s244 = scalar_lea.vmem [#allocation5], %s243
          %245 = dma.done %s241, 512
        $region44: #{tpu_custom_call.1} parent=39 // pred_fallthru
          _
      $region40: #{tpu_custom_call.1} parent=5 // pred_fallthru
        _
    $region6: #{tpu_custom_call.1} parent=1 // loop_footer
      %s18 = sadd.s32 1, %s14
    $region7: #{tpu_custom_call.1} parent=1 // loop_footer_branch
      %13 = sbr.rel target = $region3
    $region8: #{tpu_custom_call.1} parent=1 // loop_exit
      _
    %246 = vsyncpa [#allocation3], 1
    %s247 = scalar_lea.sflag [#allocation3], 1
    %248 = vsyncpa %s247, 1
    %249 = vsyncpa [#allocation4], 1
    %s250 = scalar_lea.sflag [#allocation4], 1
    %251 = vsyncpa %s250, 1

</llo_original>
